<compile_context>
chip_gen: v7x
topology: tpu7x:2x2x1
jax: 0.10.0
libtpu: 0.0.40
codegen_flags: <defaults>
</compile_context>

<pallas_src>
import functools

import jax
import jax.numpy as jnp
from jax.experimental import pallas as pl
from jax.experimental.pallas import tpu as pltpu


def _round_up(x, m):
    return (x + m - 1) // m * m


def _pick_divisor_tile(total, target, unit=128):
    """Largest multiple of `unit` that divides `total` and is <= max(target, unit).
    `total` must itself be a multiple of `unit`."""
    if total <= target:
        return total
    units = total // unit
    max_units = max(1, target // unit)
    best = 1
    for d in range(1, max_units + 1):
        if units % d == 0:
            best = d
    return best * unit


@functools.lru_cache(maxsize=1)
def _vmem_capacity_bytes():
    """Per-core VMEM capacity (generation aware, conservative fallbacks)."""
    try:
        return int(pltpu.get_tpu_info().vmem_capacity_bytes)
    except Exception:
        pass
    try:
        kind = jax.devices()[0].device_kind.lower()
    except Exception:
        kind = ""
    if "v7" in kind:
        return 64 << 20
    return 128 << 20  # v2..v6e: 128 MiB per core


@functools.lru_cache(maxsize=1)
def _single_buffer_supported():
    """Whether BlockSpec(pipeline_mode=pl.Buffered(1)) is available to single-buffer
    grid-invariant operands (halves the resident weight's VMEM footprint)."""
    if not hasattr(pl, "Buffered"):
        return False
    try:
        pl.BlockSpec((8, 128), lambda i, j, k: (0, 0), pipeline_mode=pl.Buffered(1))
    except Exception:
        return False
    return True


def _block_spec(shape, index_map, *, single_buffer=False):
    if single_buffer and _single_buffer_supported():
        return pl.BlockSpec(shape, index_map, pipeline_mode=pl.Buffered(1))
    return pl.BlockSpec(shape, index_map)


# ----------------------------- kernel bodies --------------------------------


def _mlp_kernel_fused(x_ref, w_ref, b_ref, o_ref):
    # Whole contraction in one slab: no scratch accumulator, write straight out.
    acc = jnp.dot(x_ref[...].astype(w_ref.dtype), w_ref[...],
                  preferred_element_type=jnp.float32)
    o_ref[...] = jnp.tanh(acc + b_ref[...]).astype(o_ref.dtype)


def _mlp_kernel_ktiled(x_ref, w_ref, b_ref, o_ref, acc_ref):
    # K tiled: f32 VMEM accumulator resident across the (innermost) k grid axis.
    k = pl.program_id(2)
    part = jnp.dot(x_ref[...].astype(w_ref.dtype), w_ref[...],
                   preferred_element_type=jnp.float32)

    @pl.when(k == 0)
    def _():
        acc_ref[...] = part          # first slab: write directly, no zero + add

    @pl.when(k > 0)
    def _():
        acc_ref[...] += part

    @pl.when(k == pl.num_programs(2) - 1)
    def _():
        # f32 epilogue (bias + tanh on the EUP); cast only at the final store.
        o_ref[...] = jnp.tanh(acc_ref[...] + b_ref[...]).astype(o_ref.dtype)


# ----------------------------- host-side wrapper -----------------------------


def prepare_mlp_params(weight, bias, *, compute_dtype=jnp.bfloat16):
    """One-time (init-time) prep: transpose PyTorch [out, in] weight to [in, out],
    zero-pad hidden dims to lane/MXU-friendly multiples, cast to compute dtype."""
    h_out, h_in = weight.shape
    kp = _round_up(h_in, 128)
    hp = _round_up(h_out, 128)
    # MXU-friendly alignment for big layers (v6e/v7x MXU tile is 256x256; the
    # streamed-K path uses 512-wide K slabs).  Only when padding overhead is tiny.
    if h_out >= 2048 and hp % 256:
        hp = _round_up(h_out, 256)
    if h_in >= 2048 and kp % 512:
        kp = _round_up(h_in, 512)
    w_t = jnp.transpose(weight).astype(compute_dtype)            # [H_in, H_out]
    w_t = jnp.pad(w_t, ((0, kp - h_in), (0, hp - h_out)))
    b2 = jnp.pad(bias.astype(jnp.float32), (0, hp - h_out)).reshape(1, hp)
    return w_t, b2, (h_in, h_out)


def mlp_layer(features, w_t, b2, dims, *, tile_n=None):
    """features: [..., H_in]; returns tanh(features @ W.T + b): [..., H_out]."""
    h_in, h_out = dims
    assert features.shape[-1] == h_in
    lead = features.shape[:-1]
    out_dtype = features.dtype
    x = features.reshape(-1, h_in)
    n = x.shape[0]
    kp, hp = w_t.shape

    x_item = jnp.dtype(x.dtype).itemsize
    w_item = jnp.dtype(w_t.dtype).itemsize
    o_item = jnp.dtype(out_dtype).itemsize

    # ---- generation-aware VMEM budget --------------------------------------
    vmem_cap = _vmem_capacity_bytes()
    budget = (vmem_cap * 3) // 4           # ~96 MiB on v5e/v6e, ~48 MiB on v7x

    # ---- weight residency / K & H_out tiling -------------------------------
    w_bytes = kp * hp * w_item
    resident_db = 2 * w_bytes <= budget // 2                  # fits double-buffered
    resident = resident_db or (_single_buffer_supported() and w_bytes <= budget // 2)
    w_single = resident and not resident_db                   # needs Buffered(1)
    w_bufs = 1 if w_single else 2

    if resident:
        tile_k, tile_h = kp, hp            # whole weight VMEM-resident, DMA'd once
    else:
        tile_k = _pick_divisor_tile(kp, 512)
        tile_h = hp
        # H_out column tiling: keep the double-buffered weight slab under ~1/3 of
        # the budget (VMEM fit on v7x; extra parallel axis for megacore).
        while 2 * tile_k * tile_h * w_item > budget // 3 and tile_h > 128:
            tile_h = _pick_divisor_tile(hp, tile_h // 2)
    num_k = kp // tile_k
    num_j = hp // tile_h

    # ---- row tiling ----------------------------------------------------------
    def _vmem_est(tn):
        est = (2 * tn * tile_k * x_item              # x tile (double-buffered)
               + w_bufs * tile_k * tile_h * w_item   # weight slab
               + 2 * tile_h * 4                      # bias row
               + 2 * tn * tile_h * o_item)           # out tile (double-buffered)
        if num_k > 1:
            est += tn * tile_h * 4                   # f32 accumulator scratch
        return est

    if tile_n is None:
        # Streamed weight: tile_n sets FLOP/weight-byte (v6e crossover ~700), go
        # wide.  Resident weight: 512 is already MXU-bound.
        tile_n = 512 if resident else 1024
    tile_n = max(16, _round_up(tile_n, 16))
    while _vmem_est(tile_n) > budget and tile_n > 16:
        tile_n = max(16, _round_up(tile_n // 2, 16))
    tile_n = min(tile_n, n)                # small batch: one full-height row block
    num_i = pl.cdiv(n, tile_n)

    # ---- K padding only (rows are partial blocks: no extra HBM pass over x) --
    if kp != h_in:
        x = jnp.pad(x, ((0, 0), (0, kp - h_in)))     # zero pad: exact

    grid = (num_i, num_j, num_k)

    in_specs = [
        _block_spec((tile_n, tile_k), lambda i, j, k: (i, k)),                  # x
        _block_spec((tile_k, tile_h), lambda i, j, k: (k, j),
                    single_buffer=w_single),                                    # W
        _block_spec((1, tile_h), lambda i, j, k: (0, j)),                       # b
    ]
    out_spec = pl.BlockSpec((tile_n, tile_h), lambda i, j, k: (i, j))

    if num_k == 1:
        kernel, scratch = _mlp_kernel_fused, []
    else:
        kernel = _mlp_kernel_ktiled
        scratch = [pltpu.VMEM((tile_n, tile_h), jnp.float32)]
    # TODO(synk): parity double-buffered accumulator (scratch (2, tile_n, tile_h))
    # to overlap the bias+tanh epilogue with the next row tile's k=0 matmul on
    # v5e/v6e when num_k is small.

    est = _vmem_est(tile_n)
    vmem_limit = int(min(budget, max(32 << 20, 2 * est)))

    # Weight is re-streamed once per row tile when not resident; x re-read per
    # column tile.
    cost = pl.CostEstimate(
        flops=2 * n * kp * hp,
        transcendentals=n * hp,
        bytes_accessed=int(num_j * n * kp * x_item
                           + (1 if resident else num_i) * kp * hp * w_item
                           + hp * 4
                           + n * hp * o_item),
    )

    out = pl.pallas_call(
        kernel,
        out_shape=jax.ShapeDtypeStruct((n, hp), out_dtype),
        grid_spec=pltpu.PrefetchScalarGridSpec(
            num_scalar_prefetch=0,
            grid=grid,
            in_specs=in_specs,
            out_specs=out_spec,
            scratch_shapes=scratch,
        ),
        compiler_params=pltpu.CompilerParams(
            dimension_semantics=("parallel", "parallel", "arbitrary"),
            vmem_limit_bytes=vmem_limit,
        ),
        cost_estimate=cost,
    )(x, w_t, b2)

    if hp != h_out:
        out = out[:, :h_out]
    return out.reshape(*lead, h_out)


if __name__ == "__main__":
    key = jax.random.PRNGKey(0)
    k_x, k_w, k_b = jax.random.split(key, 3)

    batch = 4
    hidden = 32  # config.hidden_size (small demo shape)

    x = jax.random.normal(k_x, (batch, hidden), dtype=jnp.float32)
    # Deterministic init mimicking nn.Linear default (uniform in +/- 1/sqrt(fan_in))
    bound = 1.0 / jnp.sqrt(hidden)
    w = jax.random.uniform(k_w, (hidden, hidden), minval=-bound, maxval=bound,
                           dtype=jnp.float32)  # [out, in] (PyTorch layout)
    b = jax.random.uniform(k_b, (hidden,), minval=-bound, maxval=bound,
                           dtype=jnp.float32)

    ref = jnp.tanh(x @ w.T + b)

    # f32 operand path: exact match against the reference.
    w32, b32, dims32 = prepare_mlp_params(w, b, compute_dtype=jnp.float32)
    out32 = jax.block_until_ready(mlp_layer(x, w32, b32, dims32))
    assert out32.shape == (batch, hidden)
    assert jnp.allclose(out32, ref, atol=1e-5, rtol=1e-5)

    # bf16 weight path (default): MXU-native dtype; x is cast to bf16 inside the
    # kernel (no wrapper-side cast/pad pass over the activations).
    wbf, bbf, dimsbf = prepare_mlp_params(w, b)
    outbf = jax.block_until_ready(mlp_layer(x, wbf, bbf, dimsbf))
    assert outbf.shape == (batch, hidden)
    assert jnp.allclose(outbf, ref, atol=2e-2, rtol=2e-2)

    print("KERNEL_OK")
</pallas_src>

<mosaic_0001>
module attributes {stable_mosaic.version = 11 : i64} {
  func.func @_mlp_kernel_fused(%arg0: i32, %arg1: i32, %arg2: i32, %arg3: memref<4x128xf32, #tpu.memory_space<vmem>>, %arg4: memref<128x128xf32, #tpu.memory_space<vmem>>, %arg5: memref<1x128xf32, #tpu.memory_space<vmem>>, %arg6: memref<4x128xf32, #tpu.memory_space<vmem>>) attributes {dimension_semantics = [#tpu.dimension_semantics<parallel>, #tpu.dimension_semantics<parallel>, #tpu.dimension_semantics<arbitrary>], iteration_bounds = array<i64: 1, 1, 1>, scalar_prefetch = 0 : i64, scratch_operands = 0 : i64, tpu.core_type = #tpu.core_type<tc>, window_params = [{transform_indices = @transform_0, window_bounds = array<i64: 4, 128>}, {transform_indices = @transform_1, window_bounds = array<i64: 128, 128>}, {transform_indices = @transform_2, window_bounds = array<i64: 1, 128>}, {transform_indices = @transform_3, window_bounds = array<i64: 4, 128>}]} {
    %c0 = arith.constant 0 : index
    %c0_0 = arith.constant 0 : index
    %0 = vector.load %arg3[%c0, %c0_0] : memref<4x128xf32, #tpu.memory_space<vmem>>, vector<4x128xf32>
    %c0_1 = arith.constant 0 : index
    %c0_2 = arith.constant 0 : index
    %1 = vector.load %arg4[%c0_1, %c0_2] : memref<128x128xf32, #tpu.memory_space<vmem>>, vector<128x128xf32>
    %cst = arith.constant dense<0.000000e+00> : vector<4x128xf32>
    %2 = tpu.matmul %0, %1, %cst {dimension_numbers = #tpu.dot_dimension_numbers<[1], [0], [0], [1], [0, 0, 1, 1], [], []>} : vector<4x128xf32>, vector<128x128xf32>, vector<4x128xf32> -> vector<4x128xf32>
    %c0_3 = arith.constant 0 : index
    %c0_4 = arith.constant 0 : index
    %3 = vector.load %arg5[%c0_3, %c0_4] : memref<1x128xf32, #tpu.memory_space<vmem>>, vector<1x128xf32>
    %4 = vector.broadcast %3 : vector<1x128xf32> to vector<4x128xf32>
    %5 = arith.addf %2, %4 : vector<4x128xf32>
    %6 = math.tanh %5 : vector<4x128xf32>
    %c0_5 = arith.constant 0 : index
    %c0_6 = arith.constant 0 : index
    %7 = vector.load %arg6[%c0_5, %c0_6] : memref<4x128xf32, #tpu.memory_space<vmem>>, vector<4x128xf32>
    tpu.vector_store %arg6[%c0_5, %c0_6], %6 {strides = array<i32>} : memref<4x128xf32, #tpu.memory_space<vmem>>, vector<4x128xf32>,
    return
  }
  func.func @transform_0(%arg0: i32, %arg1: i32, %arg2: i32) -> (i32, i32) {
    %c0_i32 = arith.constant 0 : i32
    return %arg0, %arg2 : i32, i32
  }
  func.func @transform_1(%arg0: i32, %arg1: i32, %arg2: i32) -> (i32, i32) {
    %c0_i32 = arith.constant 0 : i32
    return %arg2, %arg1 : i32, i32
  }
  func.func @transform_2(%arg0: i32, %arg1: i32, %arg2: i32) -> (i32, i32) {
    %c0_i32 = arith.constant 0 : i32
    %c0_i32_0 = arith.constant 0 : i32
    return %c0_i32, %arg1 : i32, i32
  }
  func.func @transform_3(%arg0: i32, %arg1: i32, %arg2: i32) -> (i32, i32) {
    %c0_i32 = arith.constant 0 : i32
    return %arg0, %arg1 : i32, i32
  }
}

</mosaic_0001>

<llo_original>
// kernel: tpu_custom_call.1
$region0: #{tpu_custom_call.1}
  #allocation0 [shape = 'u32[]', space=smem, size = 0x4, offset = 0x4, fixed_abs, tag = 'smem constant byte address 0x4 - core index']
  #allocation1 [shape = 'u32[144,128]{1,0:T(1,128)}', space=vmem, size = 0x12000, scoped, tag = 'internal scratch']
  %s0 = inlined_call_operand.hbm [shape: f32[4,128], index: 0, kind: input, shape index: {}]
  %s1 = inlined_call_operand.hbm [shape: f32[128,128], index: 1, kind: input, shape index: {}]
  %s2 = inlined_call_operand.vmem [shape: f32[1,128], index: 2, kind: input, shape index: {}]
  %s3 = inlined_call_operand.hbm [shape: f32[4,128], index: 3, kind: output, shape index: {}]
  %s4 = sld [smem:[#allocation0]]
  $region30: #{tpu_custom_call.1} parent=0
    _
  %s6 = ssub.s32 1, %s4
  %s7 = scalar_select 0, %s6, %s4
  $region1: #{tpu_custom_call.1} parent=0
    #allocation2 [shape = 'u8[2048]{0}', space=vmem, size = 0x800, scoped, tag = 'input window, operand 0, single buffered']
    #allocation3 [shape = 's32[1]{0}', space=sflag, size = 0x4, scoped, tag = 'scoped memory for tpu_custom_call.1']
    #allocation4 [shape = 's32[1]{0}', space=sflag, size = 0x4, scoped, tag = 'scoped memory for tpu_custom_call.1']
    #allocation5 [shape = 'u8[65536]{0}', space=vmem, size = 0x10000, scoped, tag = 'input window, operand 1, single buffered']
    #allocation6 [shape = 's32[1]{0}', space=sflag, size = 0x4, scoped, tag = 'scoped memory for tpu_custom_call.1']
    #allocation7 [shape = 'u8[2048]{0}', space=vmem, size = 0x800, scoped, tag = 'output window, operand 0, single buffered']
    %8 = vsyncpa [#allocation3], 0
    %9 = vsyncpa [#allocation6], 0
    %10 = vsyncpa [#allocation4], 0
    // Predicated region
    $region2: #{tpu_custom_call.1} parent=1 // pred_check
      _
    $region3: #{tpu_custom_call.1} parent=1 // pred_check_branch
      %12 = sbr.rel (0) target = $region5
    $region4: #{tpu_custom_call.1} parent=1 // pred_region
      %s14 = ssub.s32 64, 64
      %15 = vsyncadd [#allocation3], %s14
      %s17 = sshll.u32 [#allocation2], 4
      %s18 = int_to_ptr.vmem [resolvable:$true] %s17
      %20 = dma.hbm_to_vmem [thread:$0]  %s0, 64, %s18, [#allocation3]
    $region5: #{tpu_custom_call.1} parent=1 // pred_fallthru
      _
    // Predicated region
    $region6: #{tpu_custom_call.1} parent=1 // pred_check
      _
    $region7: #{tpu_custom_call.1} parent=1 // pred_check_branch
      %22 = sbr.rel (0) target = $region9
    $region8: #{tpu_custom_call.1} parent=1 // pred_region
      %s24 = ssub.s32 2048, 2048
      %25 = vsyncadd [#allocation6], %s24
      %s26 = sshll.u32 [#allocation5], 4
      %s27 = int_to_ptr.vmem [resolvable:$true] %s26
      %32 = dma.hbm_to_vmem [thread:$0]  %s1, 2048, %s27, [#allocation6], 128, 128, 8
    $region9: #{tpu_custom_call.1} parent=1 // pred_fallthru
      _
    // Predicated region
    $region10: #{tpu_custom_call.1} parent=1 // pred_check
      _
    $region11: #{tpu_custom_call.1} parent=1 // pred_check_branch
      %34 = sbr.rel (0) target = $region13
    $region12: #{tpu_custom_call.1} parent=1 // pred_region
      _
    $region13: #{tpu_custom_call.1} parent=1 // pred_fallthru
      _
    // Predicated region
    $region14: #{tpu_custom_call.1} parent=1 // pred_check
      _
    $region15: #{tpu_custom_call.1} parent=1 // pred_check_branch
      %36 = sbr.rel (0) target = $region17
    $region16: #{tpu_custom_call.1} parent=1 // pred_region
      %37 = dma.done [#allocation3], 64
    $region17: #{tpu_custom_call.1} parent=1 // pred_fallthru
      _
    // Predicated region
    $region18: #{tpu_custom_call.1} parent=1 // pred_check
      _
    $region19: #{tpu_custom_call.1} parent=1 // pred_check_branch
      %39 = sbr.rel (0) target = $region21
    $region20: #{tpu_custom_call.1} parent=1 // pred_region
      %40 = dma.done [#allocation6], 2048
    $region21: #{tpu_custom_call.1} parent=1 // pred_fallthru
      _
    %v41 = vld [vmem:[#allocation2] sm:$0xf]
    %v42 = vld [vmem:[#allocation5] sm:$0xff]
    %v43 = vld [vmem:[#allocation5 + $0x8] sm:$0xff]
    %v44 = vld [vmem:[#allocation5 + $0x10] sm:$0xff]
    %v45 = vld [vmem:[#allocation5 + $0x18] sm:$0xff]
    %v46 = vld [vmem:[#allocation5 + $0x20] sm:$0xff]
    %v47 = vld [vmem:[#allocation5 + $0x28] sm:$0xff]
    %v48 = vld [vmem:[#allocation5 + $0x30] sm:$0xff]
    %v49 = vld [vmem:[#allocation5 + $0x38] sm:$0xff]
    %v50 = vld [vmem:[#allocation5 + $0x40] sm:$0xff]
    %v51 = vld [vmem:[#allocation5 + $0x48] sm:$0xff]
    %v52 = vld [vmem:[#allocation5 + $0x50] sm:$0xff]
    %v53 = vld [vmem:[#allocation5 + $0x58] sm:$0xff]
    %v54 = vld [vmem:[#allocation5 + $0x60] sm:$0xff]
    %v55 = vld [vmem:[#allocation5 + $0x68] sm:$0xff]
    %v56 = vld [vmem:[#allocation5 + $0x70] sm:$0xff]
    %v57 = vld [vmem:[#allocation5 + $0x78] sm:$0xff]
    %v58 = vld [vmem:[%s2] sm:$0x1]
    %v60 = vlaneseq
    %v61 = vshrl.u32 %v60, 7
    %v62 = vsub.s32 0, %v61
    %v63 = vrot.slane %v58, %v62
    %65 = vmatprep.subr.mxu0 0.0
    %66 = vmatpush1.msra.mxu0 %v42
    %67 = vmatprep.subr.mxu0 0.0
    %68 = vmatpush1.msra.mxu0 %v43
    %69 = vmatprep.subr.mxu0 0.0
    %70 = vmatpush1.msra.mxu0 %v44
    %71 = vmatprep.subr.mxu0 0.0
    %72 = vmatpush1.msra.mxu0 %v45
    %73 = vmatprep.subr.mxu0 0.0
    %74 = vmatpush1.msra.mxu0 %v46
    %75 = vmatprep.subr.mxu0 0.0
    %76 = vmatpush1.msra.mxu0 %v47
    %77 = vmatprep.subr.mxu0 0.0
    %78 = vmatpush1.msra.mxu0 %v48
    %79 = vmatprep.subr.mxu0 0.0
    %80 = vmatpush1.msra.mxu0 %v49
    %81 = vmatprep.subr.mxu0 0.0
    %82 = vmatpush1.msra.mxu0 %v50
    %83 = vmatprep.subr.mxu0 0.0
    %84 = vmatpush1.msra.mxu0 %v51
    %85 = vmatprep.subr.mxu0 0.0
    %86 = vmatpush1.msra.mxu0 %v52
    %87 = vmatprep.subr.mxu0 0.0
    %88 = vmatpush1.msra.mxu0 %v53
    %89 = vmatprep.subr.mxu0 0.0
    %90 = vmatpush1.msra.mxu0 %v54
    %91 = vmatprep.subr.mxu0 0.0
    %92 = vmatpush1.msra.mxu0 %v55
    %93 = vmatprep.subr.mxu0 0.0
    %94 = vmatpush1.msra.mxu0 %v56
    %95 = vmatprep.subr.mxu0 0.0
    %96 = vmatpush1.msra.mxu0 %v57
    %97 = vmatprep.subr.mxu0 0.0
    %98 = vmatpush1.msra.mxu0 0.0
    %99 = vmatprep.subr.mxu0 0.0
    %100 = vmatpush1.msra.mxu0 0.0
    %101 = vmatprep.subr.mxu0 0.0
    %102 = vmatpush1.msra.mxu0 0.0
    %103 = vmatprep.subr.mxu0 0.0
    %104 = vmatpush1.msra.mxu0 0.0
    %105 = vmatprep.subr.mxu0 0.0
    %106 = vmatpush1.msra.mxu0 0.0
    %107 = vmatprep.subr.mxu0 0.0
    %108 = vmatpush1.msra.mxu0 0.0
    %109 = vmatprep.subr.mxu0 0.0
    %110 = vmatpush1.msra.mxu0 0.0
    %111 = vmatprep.subr.mxu0 0.0
    %112 = vmatpush1.msra.mxu0 0.0
    %113 = vmatprep.subr.mxu0 0.0
    %114 = vmatpush1.msra.mxu0 0.0
    %115 = vmatprep.subr.mxu0 0.0
    %116 = vmatpush1.msra.mxu0 0.0
    %117 = vmatprep.subr.mxu0 0.0
    %118 = vmatpush1.msra.mxu0 0.0
    %119 = vmatprep.subr.mxu0 0.0
    %120 = vmatpush1.msra.mxu0 0.0
    %121 = vmatprep.subr.mxu0 0.0
    %122 = vmatpush1.msra.mxu0 0.0
    %123 = vmatprep.subr.mxu0 0.0
    %124 = vmatpush1.msra.mxu0 0.0
    %125 = vmatprep.subr.mxu0 0.0
    %126 = vmatpush1.msra.mxu0 0.0
    %127 = vmatprep.subr.mxu0 0.0
    %128 = vmatpush1.msra.mxu0 0.0
    %129 = vmatprep.mubr.f32.mxu0 0.0
    %130 = vmatmul.mubr.f32.gmra.mrb[0].mxu0 %v41
    %v131 = vpop.f32.mrb[0].mxu0
    %v132 = vadd.f32 %v63, %v131
    %v133 = vpop.f32.mrb[0].mxu0
    %134 = vdwg.mxu0
    %v135 = vtanh.pop %v132
    %136 = vst [vmem:[#allocation7] sm:$0xf] %v135
    // Predicated region
    $region22: #{tpu_custom_call.1} parent=1 // pred_check
      _
    $region23: #{tpu_custom_call.1} parent=1 // pred_check_branch
      %138 = sbr.rel (0) target = $region25
    $region24: #{tpu_custom_call.1} parent=1 // pred_region
      %s140 = ssub.s32 64, 64
      %141 = vsyncadd [#allocation4], %s140
      %s143 = sshll.u32 [#allocation7], 4
      %s144 = int_to_ptr.vmem [resolvable:$true] %s143
      %146 = dma.vmem_to_hbm [thread:$0]  %s144, 64, %s3, [#allocation4]
    $region25: #{tpu_custom_call.1} parent=1 // pred_fallthru
      _
    // Predicated region
    $region26: #{tpu_custom_call.1} parent=1 // pred_check
      _
    $region27: #{tpu_custom_call.1} parent=1 // pred_check_branch
      %148 = sbr.rel (0) target = $region29
    $region28: #{tpu_custom_call.1} parent=1 // pred_region
      %149 = dma.done [#allocation4], 64
    $region29: #{tpu_custom_call.1} parent=1 // pred_fallthru
      _
    %150 = vsyncpa [#allocation3], 1
    %151 = vsyncpa [#allocation6], 1
    %152 = vsyncpa [#allocation4], 1

</llo_original>
